<compile_context>
chip_gen: v5e
topology: v5e:2x2
jax: 0.10.0
libtpu: 0.0.40
codegen_flags: <defaults>
</compile_context>

<pallas_src>
import jax
import jax.numpy as jnp
from jax.experimental import pallas as pl
from jax.experimental.pallas import tpu as pltpu


def _round_up(x: int, m: int) -> int:
    return ((x + m - 1) // m) * m


def a2c_fused_kernel(x_ref, w1_ref, b1_ref, w23_ref, b23_ref, out_ref):
    # linear_l1 + ReLU (f32 accumulate on MXU, f32 VPU elementwise)
    y = jnp.dot(x_ref[...], w1_ref[...], preferred_element_type=jnp.float32) + b1_ref[...]
    y = jnp.maximum(y, 0.0)
    # fused actor|critic head: single MXU push, single (lane-denser) store
    out_ref[...] = (
        jnp.dot(y, w23_ref[...], preferred_element_type=jnp.float32) + b23_ref[...]
    ).astype(out_ref.dtype)


def a2c_net_simple_linear(x, w1, b1, w2, b2, w3, b3, *, tile_b: int = 512):
    """Pallas forward pass of A2CNetSimpleLinear.

    x  : [B, n_columns]
    w1 : [n_columns, n_actions], b1 : [1, n_actions]
    w2 : [n_actions, n_actions], b2 : [1, n_actions]
    w3 : [n_actions, 1],         b3 : [1, 1]
    returns (actor [B, n_actions], critic [B, 1])
    """
    B, n_columns = x.shape
    n_actions = w1.shape[1]
    n_out = n_actions + 1  # fused actor (+1 critic) width

    # Fuse the two heads in the wrapper: one matmul / one output in the kernel.
    w23 = jnp.concatenate([w2, w3], axis=1)  # [n_actions, n_actions + 1]
    b23 = jnp.concatenate([b2, b3], axis=1)  # [1, n_actions + 1]

    # Batch tiling: tile must be a multiple of 8 (sublane); pad B up to a whole
    # number of tiles. For tiny B this collapses to a single 8-row grid step.
    b_aligned = _round_up(max(B, 1), 8)
    tile_b = min(_round_up(tile_b, 8), b_aligned)
    b_pad = _round_up(b_aligned, tile_b)
    x_p = jnp.pad(x, ((0, b_pad - B), (0, 0))) if b_pad != B else x

    grid = (b_pad // tile_b,)

    fused = pl.pallas_call(
        a2c_fused_kernel,
        out_shape=jax.ShapeDtypeStruct((b_pad, n_out), jnp.float32),
        grid=grid,
        in_specs=[
            # activations: blocked over batch, pipelined / double-buffered
            pl.BlockSpec((tile_b, n_columns), lambda i: (i, 0)),
            # weights & biases: full-array blocks, constant index -> fetched once
            pl.BlockSpec((n_columns, n_actions), lambda i: (0, 0)),
            pl.BlockSpec((1, n_actions), lambda i: (0, 0)),
            pl.BlockSpec((n_actions, n_out), lambda i: (0, 0)),
            pl.BlockSpec((1, n_out), lambda i: (0, 0)),
        ],
        out_specs=pl.BlockSpec((tile_b, n_out), lambda i: (i, 0)),
        compiler_params=pltpu.CompilerParams(
            dimension_semantics=("parallel",),  # shard batch across TCs on v7x
        ),
    )(x_p, w1, b1, w23, b23)

    actor = fused[:B, :n_actions]
    critic = fused[:B, n_actions:]
    return actor, critic


def _init_linear(key, fan_in, fan_out):
    """PyTorch-style uniform(-1/sqrt(fan_in), 1/sqrt(fan_in)) init.

    Weight stored as [fan_in, fan_out], bias as [1, fan_out].
    """
    kw, kb = jax.random.split(key)
    bound = 1.0 / jnp.sqrt(jnp.float32(fan_in))
    w = jax.random.uniform(kw, (fan_in, fan_out), jnp.float32, -bound, bound)
    b = jax.random.uniform(kb, (1, fan_out), jnp.float32, -bound, bound)
    return w, b


def reference_forward(x, w1, b1, w2, b2, w3, b3):
    y = jnp.maximum(x @ w1 + b1, 0.0)
    return y @ w2 + b2, y @ w3 + b3


if __name__ == "__main__":
    # NOTE: at these toy shapes (16 -> 8 -> 8/1, B=2) a Pallas kernel cannot beat
    # plain XLA fusion; the tiling/fusion here is for production batch sizes.
    n_columns = 16
    n_actions = 8
    batch = 2

    key = jax.random.PRNGKey(0)
    kx, k1, k2, k3 = jax.random.split(key, 4)

    x = jax.random.normal(kx, (batch, n_columns), jnp.float32)
    w1, b1 = _init_linear(k1, n_columns, n_actions)  # linear_l1
    w2, b2 = _init_linear(k2, n_actions, n_actions)  # actor
    w3, b3 = _init_linear(k3, n_actions, 1)          # critic

    actor, critic = a2c_net_simple_linear(x, w1, b1, w2, b2, w3, b3)
    jax.block_until_ready((actor, critic))

    ref_actor, ref_critic = reference_forward(x, w1, b1, w2, b2, w3, b3)
    assert actor.shape == (batch, n_actions), actor.shape
    assert critic.shape == (batch, 1), critic.shape
    assert jnp.allclose(actor, ref_actor, atol=1e-5, rtol=1e-5)
    assert jnp.allclose(critic, ref_critic, atol=1e-5, rtol=1e-5)

    # Also exercise a batch large enough to use multiple grid steps (pipelined path).
    big_b = 1000
    xb = jax.random.normal(jax.random.PRNGKey(1), (big_b, n_columns), jnp.float32)
    a_big, c_big = a2c_net_simple_linear(xb, w1, b1, w2, b2, w3, b3)
    jax.block_until_ready((a_big, c_big))
    ra, rc = reference_forward(xb, w1, b1, w2, b2, w3, b3)
    assert a_big.shape == (big_b, n_actions) and c_big.shape == (big_b, 1)
    assert jnp.allclose(a_big, ra, atol=1e-5, rtol=1e-5)
    assert jnp.allclose(c_big, rc, atol=1e-5, rtol=1e-5)

    print("KERNEL_OK")
</pallas_src>

<mosaic_0001>
module attributes {stable_mosaic.version = 11 : i64} {
  func.func @a2c_fused_kernel(%arg0: i32, %arg1: memref<8x16xf32, #tpu.memory_space<vmem>>, %arg2: memref<16x8xf32, #tpu.memory_space<vmem>>, %arg3: memref<1x8xf32, #tpu.memory_space<vmem>>, %arg4: memref<8x9xf32, #tpu.memory_space<vmem>>, %arg5: memref<1x9xf32, #tpu.memory_space<vmem>>, %arg6: memref<8x9xf32, #tpu.memory_space<vmem>>) attributes {dimension_semantics = [#tpu.dimension_semantics<parallel>], iteration_bounds = array<i64: 1>, scalar_prefetch = 0 : i64, scratch_operands = 0 : i64, tpu.core_type = #tpu.core_type<tc>, window_params = [{transform_indices = @transform_0, window_bounds = array<i64: 8, 16>}, {pipeline_mode = #tpu.pipeline_mode<synchronous>, transform_indices = @transform_1, window_bounds = array<i64: 16, 8>}, {pipeline_mode = #tpu.pipeline_mode<synchronous>, transform_indices = @transform_2, window_bounds = array<i64: 1, 8>}, {pipeline_mode = #tpu.pipeline_mode<synchronous>, transform_indices = @transform_3, window_bounds = array<i64: 8, 9>}, {pipeline_mode = #tpu.pipeline_mode<synchronous>, transform_indices = @transform_4, window_bounds = array<i64: 1, 9>}, {transform_indices = @transform_5, window_bounds = array<i64: 8, 9>}]} {
    %c0 = arith.constant 0 : index
    %c0_0 = arith.constant 0 : index
    %0 = vector.load %arg1[%c0, %c0_0] : memref<8x16xf32, #tpu.memory_space<vmem>>, vector<8x16xf32>
    %c0_1 = arith.constant 0 : index
    %c0_2 = arith.constant 0 : index
    %1 = vector.load %arg2[%c0_1, %c0_2] : memref<16x8xf32, #tpu.memory_space<vmem>>, vector<16x8xf32>
    %cst = arith.constant dense<0.000000e+00> : vector<8x8xf32>
    %2 = tpu.matmul %0, %1, %cst {dimension_numbers = #tpu.dot_dimension_numbers<[1], [0], [0], [1], [0, 0, 1, 1], [], []>} : vector<8x16xf32>, vector<16x8xf32>, vector<8x8xf32> -> vector<8x8xf32>
    %c0_3 = arith.constant 0 : index
    %c0_4 = arith.constant 0 : index
    %3 = vector.load %arg3[%c0_3, %c0_4] : memref<1x8xf32, #tpu.memory_space<vmem>>, vector<1x8xf32>
    %4 = vector.broadcast %3 : vector<1x8xf32> to vector<8x8xf32>
    %5 = arith.addf %2, %4 : vector<8x8xf32>
    %cst_5 = arith.constant 0.000000e+00 : f32
    %6 = vector.broadcast %cst_5 : f32 to vector<8x8xf32>
    %7 = arith.maximumf %5, %6 : vector<8x8xf32>
    %c0_6 = arith.constant 0 : index
    %c0_7 = arith.constant 0 : index
    %8 = vector.load %arg4[%c0_6, %c0_7] : memref<8x9xf32, #tpu.memory_space<vmem>>, vector<8x9xf32>
    %cst_8 = arith.constant dense<0.000000e+00> : vector<8x9xf32>
    %9 = tpu.matmul %7, %8, %cst_8 {dimension_numbers = #tpu.dot_dimension_numbers<[1], [0], [0], [1], [0, 0, 1, 1], [], []>} : vector<8x8xf32>, vector<8x9xf32>, vector<8x9xf32> -> vector<8x9xf32>
    %c0_9 = arith.constant 0 : index
    %c0_10 = arith.constant 0 : index
    %10 = vector.load %arg5[%c0_9, %c0_10] : memref<1x9xf32, #tpu.memory_space<vmem>>, vector<1x9xf32>
    %11 = vector.broadcast %10 : vector<1x9xf32> to vector<8x9xf32>
    %12 = arith.addf %9, %11 : vector<8x9xf32>
    %c0_11 = arith.constant 0 : index
    %c0_12 = arith.constant 0 : index
    %13 = vector.load %arg6[%c0_11, %c0_12] : memref<8x9xf32, #tpu.memory_space<vmem>>, vector<8x9xf32>
    tpu.vector_store %arg6[%c0_11, %c0_12], %12 {strides = array<i32>} : memref<8x9xf32, #tpu.memory_space<vmem>>, vector<8x9xf32>,
    return
  }
  func.func @transform_0(%arg0: i32) -> (i32, i32) {
    %c0_i32 = arith.constant 0 : i32
    %c0_i32_0 = arith.constant 0 : i32
    return %arg0, %c0_i32 : i32, i32
  }
  func.func @transform_1(%arg0: i32) -> (i32, i32) {
    %c0_i32 = arith.constant 0 : i32
    %c0_i32_0 = arith.constant 0 : i32
    %c0_i32_1 = arith.constant 0 : i32
    return %c0_i32, %c0_i32_0 : i32, i32
  }
  func.func @transform_2(%arg0: i32) -> (i32, i32) {
    %c0_i32 = arith.constant 0 : i32
    %c0_i32_0 = arith.constant 0 : i32
    %c0_i32_1 = arith.constant 0 : i32
    return %c0_i32, %c0_i32_0 : i32, i32
  }
  func.func @transform_3(%arg0: i32) -> (i32, i32) {
    %c0_i32 = arith.constant 0 : i32
    %c0_i32_0 = arith.constant 0 : i32
    %c0_i32_1 = arith.constant 0 : i32
    return %c0_i32, %c0_i32_0 : i32, i32
  }
  func.func @transform_4(%arg0: i32) -> (i32, i32) {
    %c0_i32 = arith.constant 0 : i32
    %c0_i32_0 = arith.constant 0 : i32
    %c0_i32_1 = arith.constant 0 : i32
    return %c0_i32, %c0_i32_0 : i32, i32
  }
  func.func @transform_5(%arg0: i32) -> (i32, i32) {
    %c0_i32 = arith.constant 0 : i32
    %c0_i32_0 = arith.constant 0 : i32
    return %arg0, %c0_i32 : i32, i32
  }
}

</mosaic_0001>

<llo_original>
// kernel: tpu_custom_call.1
$region0: #{tpu_custom_call.1}
  #allocation0 [shape = 'u32[]', space=smem, size = 0x4, offset = 0x4, fixed_abs, tag = 'smem constant byte address 0x4 - core index']
  #allocation1 [shape = 'u32[72,128]{1,0:T(1,128)}', space=vmem, size = 0x9000, scoped, tag = 'internal scratch']
  %s0 = inlined_call_operand.vmem [shape: f32[8,16], index: 0, kind: input, shape index: {}]
  %s1 = inlined_call_operand.vmem [shape: f32[16,8], index: 1, kind: input, shape index: {}]
  %s2 = inlined_call_operand.vmem [shape: f32[1,8], index: 2, kind: input, shape index: {}]
  %s3 = inlined_call_operand.vmem [shape: f32[8,9], index: 3, kind: input, shape index: {}]
  %s4 = inlined_call_operand.vmem [shape: f32[1,9], index: 4, kind: input, shape index: {}]
  %s5 = inlined_call_operand.hbm [shape: f32[8,9], index: 5, kind: output, shape index: {}]
  %s6 = sld [smem:[#allocation0]]
  $region30: #{tpu_custom_call.1} parent=0
    _
  %s8 = ssub.s32 1, %s6
  %s9 = scalar_select 0, %s8, %s6
  $region1: #{tpu_custom_call.1} parent=0
    #allocation2 [shape = 'u8[4096]{0}', space=vmem, size = 0x1000, scoped, tag = 'output window, operand 0, single buffered']
    #allocation3 [shape = 's32[1]{0}', space=sflag, size = 0x4, scoped, tag = 'scoped memory for tpu_custom_call.1']
    %10 = vsyncpa [#allocation3], 0
    // Predicated region
    $region2: #{tpu_custom_call.1} parent=1 // pred_check
      _
    $region3: #{tpu_custom_call.1} parent=1 // pred_check_branch
      %12 = sbr.rel (0) target = $region5
    $region4: #{tpu_custom_call.1} parent=1 // pred_region
      _
    $region5: #{tpu_custom_call.1} parent=1 // pred_fallthru
      _
    // Predicated region
    $region6: #{tpu_custom_call.1} parent=1 // pred_check
      _
    $region7: #{tpu_custom_call.1} parent=1 // pred_check_branch
      %14 = sbr.rel (0) target = $region9
    $region8: #{tpu_custom_call.1} parent=1 // pred_region
      _
    $region9: #{tpu_custom_call.1} parent=1 // pred_fallthru
      _
    // Predicated region
    $region10: #{tpu_custom_call.1} parent=1 // pred_check
      _
    $region11: #{tpu_custom_call.1} parent=1 // pred_check_branch
      %16 = sbr.rel (0) target = $region13
    $region12: #{tpu_custom_call.1} parent=1 // pred_region
      _
    $region13: #{tpu_custom_call.1} parent=1 // pred_fallthru
      _
    // Predicated region
    $region14: #{tpu_custom_call.1} parent=1 // pred_check
      _
    $region15: #{tpu_custom_call.1} parent=1 // pred_check_branch
      %18 = sbr.rel (0) target = $region17
    $region16: #{tpu_custom_call.1} parent=1 // pred_region
      _
    $region17: #{tpu_custom_call.1} parent=1 // pred_fallthru
      _
    // Predicated region
    $region18: #{tpu_custom_call.1} parent=1 // pred_check
      _
    $region19: #{tpu_custom_call.1} parent=1 // pred_check_branch
      %20 = sbr.rel (0) target = $region21
    $region20: #{tpu_custom_call.1} parent=1 // pred_region
      _
    $region21: #{tpu_custom_call.1} parent=1 // pred_fallthru
      _
    %v21 = vld [vmem:[%s0] sm:$0xff]
    %v22 = vld [vmem:[%s1] sm:$0xff]
    %v23 = vld [vmem:[%s1 + $0x8] sm:$0xff]
    %v24 = vld [vmem:[%s2] sm:$0x1]
    %v26 = vperm.slane %v24, 0
    %vm28 = vcmask 130048
    %v30 = vsel %vm28, %v21, 0
    %32 = vmatpush.msra.mxu0 0.0
    %33 = vmatpush.msra.mxu0 0.0
    %34 = vmatpush.msra.mxu0 0.0
    %35 = vmatpush.msra.mxu0 0.0
    %36 = vmatpush.msra.mxu0 0.0
    %37 = vmatpush.msra.mxu0 0.0
    %38 = vmatpush.msra.mxu0 0.0
    %39 = vmatpush.msra.mxu0 0.0
    %40 = vmatpush.msra.mxu0 0.0
    %41 = vmatpush.msra.mxu0 0.0
    %42 = vmatpush.msra.mxu0 0.0
    %43 = vmatpush.msra.mxu0 0.0
    %44 = vmatpush.msra.mxu0 0.0
    %45 = vmatpush.msra.mxu0 0.0
    %46 = vmatpush.msra.mxu0 %v23
    %47 = vmatpush.msra.mxu0 %v22
    %48 = vmatmul.f32.gmra.mxu0 %v30
    %v49 = vpop.f32.mrf.mxu0
    %v50 = vadd.f32 %v26, %v49
    %51 = vdwg.mxu0
    %v52 = vmax.f32 %v50, 0.0
    %v53 = vld [vmem:[%s3] sm:$0xff]
    %v54 = vld [vmem:[%s4] sm:$0x1]
    %v56 = vperm.slane %v54, 0
    %vm58 = vcmask 64512
    %v60 = vsel %vm58, %v52, 0
    %62 = vmatpush.msra.mxu0 0.0
    %63 = vmatpush.msra.mxu0 0.0
    %64 = vmatpush.msra.mxu0 0.0
    %65 = vmatpush.msra.mxu0 0.0
    %66 = vmatpush.msra.mxu0 0.0
    %67 = vmatpush.msra.mxu0 0.0
    %68 = vmatpush.msra.mxu0 0.0
    %69 = vmatpush.msra.mxu0 0.0
    %70 = vmatpush.msra.mxu0 0.0
    %71 = vmatpush.msra.mxu0 0.0
    %72 = vmatpush.msra.mxu0 0.0
    %73 = vmatpush.msra.mxu0 0.0
    %74 = vmatpush.msra.mxu0 0.0
    %75 = vmatpush.msra.mxu0 0.0
    %76 = vmatpush.msra.mxu0 0.0
    %77 = vmatpush.msra.mxu0 %v53
    %78 = vmatmul.f32.gmra.mxu0 %v60
    %v79 = vpop.f32.mrf.mxu0
    %v80 = vadd.f32 %v56, %v79
    %81 = vdwg.mxu0
    %vm82 = vcmask 72704
    %83 = vst.msk [vmem:[#allocation2] sm:$0xff] %vm82, %v80
    // Predicated region
    $region22: #{tpu_custom_call.1} parent=1 // pred_check
      _
    $region23: #{tpu_custom_call.1} parent=1 // pred_check_branch
      %85 = sbr.rel (0) target = $region25
    $region24: #{tpu_custom_call.1} parent=1 // pred_region
      %87 = vsyncadd [#allocation3], 0
      %s89 = sshll.u32 [#allocation2], 4
      %s90 = int_to_ptr.vmem [resolvable:$true] %s89
      %s91 = sshll.u32 %s5, 4
      %s92 = int_to_ptr.hbm [resolvable:$true] %s91
      %94 = dma.vmem_to_hbm [thread:$0]  %s90, 128, %s92, [#allocation3]
    $region25: #{tpu_custom_call.1} parent=1 // pred_fallthru
      _
    // Predicated region
    $region26: #{tpu_custom_call.1} parent=1 // pred_check
      _
    $region27: #{tpu_custom_call.1} parent=1 // pred_check_branch
      %96 = sbr.rel (0) target = $region29
    $region28: #{tpu_custom_call.1} parent=1 // pred_region
      %98 = dma.done [#allocation3], 128
    $region29: #{tpu_custom_call.1} parent=1 // pred_fallthru
      _
    %99 = vsyncpa [#allocation3], 1

</llo_original>
